<compile_context>
chip_gen: v7x
topology: tpu7x:2x2x1
jax: 0.10.0
libtpu: 0.0.40
codegen_flags: <defaults>
</compile_context>

<pallas_src>
import jax
import jax.numpy as jnp
from jax.experimental import pallas as pl
from jax.experimental.pallas import tpu as pltpu


def _round_up(x, m):
    return ((x + m - 1) // m) * m


# ---------------------------------------------------------------------------
# Pallas kernel: one channel x one tile of output rows
# ---------------------------------------------------------------------------
def _make_resize_kernel(out_dtype):
    out_is_int = jnp.issubdtype(jnp.dtype(out_dtype), jnp.integer)
    if out_is_int:
        info = jnp.iinfo(out_dtype)
        lo, hi = float(info.min), float(info.max)

    def kernel(wh_ref, x_ref, wwt_ref, o_ref):
        # wh_ref: (T, Hp)  x_ref: (1, Hp, Wp)  wwt_ref: (Wp, nWp)  o_ref: (1, T, nWp)
        tmp = jnp.dot(wh_ref[...], x_ref[0],
                      preferred_element_type=jnp.float32)            # (T, Wp)  f32
        out = jnp.dot(tmp.astype(jnp.bfloat16), wwt_ref[...],
                      preferred_element_type=jnp.float32)             # (T, nWp) f32
        if out_is_int:
            out = jnp.clip(jnp.round(out), lo, hi)
        o_ref[0] = out.astype(out_dtype)

    return kernel


def _pallas_resize(x, wh, wwt, out_dtype):
    """Resize (C, H, W) -> (C, nH, nW); wh: (nH, H) row weights, wwt: (W, nW) column weights (pre-transposed)."""
    C, H, W = x.shape
    nH = wh.shape[0]
    nW = wwt.shape[1]

    # Pad lane dims (W of x, nW of out / wwt) to multiples of 128 for dense
    # vector loads/stores; sublane / row-tile dims to multiples of 8.
    Hp = _round_up(H, 8)
    Wp = _round_up(W, 128)
    nWp = _round_up(nW, 128)
    tile_nh = 256 if nH >= 256 else _round_up(nH, 8)
    nHp = _round_up(nH, tile_nh)

    # Zero padding keeps the matmuls exact on the valid region; bf16 operands
    # hit the native MXU path (cast fuses with the pad in XLA).
    xp = jnp.pad(x, ((0, 0), (0, Hp - H), (0, Wp - W))).astype(jnp.bfloat16)
    whp = jnp.pad(wh, ((0, nHp - nH), (0, Hp - H))).astype(jnp.bfloat16)
    wwtp = jnp.pad(wwt, ((0, Wp - W), (0, nWp - nW))).astype(jnp.bfloat16)

    out = pl.pallas_call(
        _make_resize_kernel(out_dtype),
        out_shape=jax.ShapeDtypeStruct((C, nHp, nWp), out_dtype),
        grid=(C, nHp // tile_nh),
        in_specs=[
            pl.BlockSpec((tile_nh, Hp), lambda c, j: (j, 0)),
            pl.BlockSpec((1, Hp, Wp), lambda c, j: (c, 0, 0)),
            pl.BlockSpec((Wp, nWp), lambda c, j: (0, 0)),
        ],
        out_specs=pl.BlockSpec((1, tile_nh, nWp), lambda c, j: (c, j, 0)),
        compiler_params=pltpu.CompilerParams(
            dimension_semantics=("parallel", "parallel"),
            vmem_limit_bytes=48 * 1024 * 1024,
        ),
    )(whp, xp, wwtp)
    return out[:, :nH, :nW]


# ---------------------------------------------------------------------------
# Interpolation-matrix construction (plain-JAX glue, built once per call)
# ---------------------------------------------------------------------------
def _bilinear_matrix(out_size, in_size):
    """(out_size, in_size) bilinear weights, half-pixel centers (align_corners=False)."""
    # TODO(synk): no antialias filter — matches torch F.resize(tensor) default (antialias off).
    if out_size == in_size:
        return jnp.eye(in_size, dtype=jnp.float32)
    scale = in_size / out_size
    i = jnp.arange(out_size, dtype=jnp.float32)
    src = jnp.clip((i + 0.5) * scale - 0.5, 0.0, in_size - 1)
    i0 = jnp.floor(src).astype(jnp.int32)
    i1 = jnp.minimum(i0 + 1, in_size - 1)
    w1 = src - i0.astype(jnp.float32)
    w0 = 1.0 - w1
    oh0 = jax.nn.one_hot(i0, in_size, dtype=jnp.float32)
    oh1 = jax.nn.one_hot(i1, in_size, dtype=jnp.float32)
    return w0[:, None] * oh0 + w1[:, None] * oh1


def _nearest_matrix(out_size, in_size):
    """(out_size, in_size) one-hot nearest-neighbor selection matrix."""
    scale = in_size / out_size
    i = jnp.arange(out_size, dtype=jnp.float32)
    src = jnp.minimum(jnp.floor(i * scale), in_size - 1).astype(jnp.int32)
    return jax.nn.one_hot(src, in_size, dtype=jnp.float32)


# ---------------------------------------------------------------------------
# Module wrapper (mirrors the PyTorch RandomShortestSize forward)
# ---------------------------------------------------------------------------
class RandomShortestSize:
    def __init__(self, min_size, max_size):
        self.min_size = [min_size] if isinstance(min_size, int) else list(min_size)
        self.max_size = max_size
        # (no learnable parameters in this module)

    def __call__(self, key, image, target=None):
        _, orig_h, orig_w = image.shape
        # Output shapes must be static, so the random choice is pulled to the
        # host — same host sync the PyTorch module does with .item().
        idx = int(jax.random.randint(key, (), 0, len(self.min_size)))
        min_size = self.min_size[idx]
        r = min(min_size / min(orig_h, orig_w), self.max_size / max(orig_h, orig_w))
        new_w = int(orig_w * r)
        new_h = int(orig_h * r)

        wh = _bilinear_matrix(new_h, orig_h)
        wwt = _bilinear_matrix(new_w, orig_w).T          # column weights, pre-transposed
        image = _pallas_resize(image, wh, wwt, image.dtype)

        if target is not None:
            target = dict(target)
            wr = new_w / orig_w
            hr = new_h / orig_h
            # Tiny (N,4) elementwise scale: plain XLA beats a 4-lane Pallas kernel.
            scale = jnp.array([wr, hr, wr, hr], dtype=target["boxes"].dtype)
            target["boxes"] = target["boxes"] * scale
            if "masks" in target:
                masks = target["masks"]
                sh = _nearest_matrix(new_h, orig_h)
                swt = _nearest_matrix(new_w, orig_w).T
                # bf16 operands are exact for 0/1 masks with one-hot weights; no f32 upcast.
                # TODO(synk): an int8 MXU path would halve mask bytes again on v5e/v6e, but v7x has no int MXU — kept bf16 for portability.
                target["masks"] = _pallas_resize(masks, sh, swt, masks.dtype)
        return image, target


# ---------------------------------------------------------------------------
if __name__ == "__main__":
    key = jax.random.PRNGKey(0)
    k_img, k_box, k_msk, k_rand = jax.random.split(key, 4)

    C, H, W = 4, 16, 16
    image = jax.random.normal(k_img, (C, H, W), dtype=jnp.float32)
    boxes = jax.random.uniform(k_box, (5, 4), dtype=jnp.float32) * float(W)
    masks = (jax.random.uniform(k_msk, (3, H, W)) > 0.5).astype(jnp.float32)
    target = {"boxes": boxes, "masks": masks}

    transform = RandomShortestSize(min_size=[8, 12], max_size=24)
    out_image, out_target = transform(k_rand, image, target)

    jax.block_until_ready(out_image)
    jax.block_until_ready(out_target["boxes"])
    jax.block_until_ready(out_target["masks"])

    # shape sanity
    nH, nW = out_image.shape[1], out_image.shape[2]
    assert out_image.shape[0] == C
    assert out_target["masks"].shape == (masks.shape[0], nH, nW)
    assert out_target["boxes"].shape == boxes.shape

    # numeric sanity vs. plain-JAX references
    wh_ref = _bilinear_matrix(nH, H)
    ww_ref = _bilinear_matrix(nW, W)
    ref_img = jnp.einsum("ah,chw,bw->cab", wh_ref, image, ww_ref)
    assert jnp.allclose(out_image, ref_img, atol=0.1, rtol=0.1)   # bf16 MXU operands -> loose tol

    idx_h = jnp.minimum(jnp.floor(jnp.arange(nH) * (H / nH)), H - 1).astype(jnp.int32)
    idx_w = jnp.minimum(jnp.floor(jnp.arange(nW) * (W / nW)), W - 1).astype(jnp.int32)
    ref_masks = masks[:, idx_h, :][:, :, idx_w]
    assert jnp.allclose(out_target["masks"], ref_masks)           # exact for 0/1 data

    print("KERNEL_OK")
</pallas_src>

<mosaic_0001>
module attributes {stable_mosaic.version = 11 : i64} {
  func.func @kernel(%arg0: i32, %arg1: i32, %arg2: memref<16x16xbf16, #tpu.memory_space<vmem>>, %arg3: memref<1x16x128xbf16, #tpu.memory_space<vmem>>, %arg4: memref<128x128xbf16, #tpu.memory_space<vmem>>, %arg5: memref<1x16x128xf32, #tpu.memory_space<vmem>>) attributes {dimension_semantics = [#tpu.dimension_semantics<parallel>, #tpu.dimension_semantics<parallel>], iteration_bounds = array<i64: 4, 1>, scalar_prefetch = 0 : i64, scratch_operands = 0 : i64, tpu.core_type = #tpu.core_type<tc>, window_params = [{transform_indices = @transform_0, window_bounds = array<i64: 16, 16>}, {transform_indices = @transform_1, window_bounds = array<i64: 1, 16, 128>}, {pipeline_mode = #tpu.pipeline_mode<synchronous>, transform_indices = @transform_2, window_bounds = array<i64: 128, 128>}, {transform_indices = @transform_3, window_bounds = array<i64: 1, 16, 128>}]} {
    %c0 = arith.constant 0 : index
    %c0_0 = arith.constant 0 : index
    %0 = vector.load %arg2[%c0, %c0_0] : memref<16x16xbf16, #tpu.memory_space<vmem>>, vector<16x16xbf16>
    %c0_1 = arith.constant 0 : index
    %c0_2 = arith.constant 0 : index
    %c0_3 = arith.constant 0 : index
    %1 = vector.load %arg3[%c0_1, %c0_2, %c0_3] : memref<1x16x128xbf16, #tpu.memory_space<vmem>>, vector<1x16x128xbf16>
    %2 = vector.shape_cast %1 : vector<1x16x128xbf16> to vector<16x128xbf16>
    %cst = arith.constant dense<0.000000e+00> : vector<16x128xf32>
    %3 = tpu.matmul %0, %2, %cst {dimension_numbers = #tpu.dot_dimension_numbers<[1], [0], [0], [1], [0, 0, 1, 1], [], []>} : vector<16x16xbf16>, vector<16x128xbf16>, vector<16x128xf32> -> vector<16x128xf32>
    %4 = arith.truncf %3 : vector<16x128xf32> to vector<16x128xbf16>
    %c0_4 = arith.constant 0 : index
    %c0_5 = arith.constant 0 : index
    %5 = vector.load %arg4[%c0_4, %c0_5] : memref<128x128xbf16, #tpu.memory_space<vmem>>, vector<128x128xbf16>
    %cst_6 = arith.constant dense<0.000000e+00> : vector<16x128xf32>
    %6 = tpu.matmul %4, %5, %cst_6 {dimension_numbers = #tpu.dot_dimension_numbers<[1], [0], [0], [1], [0, 0, 1, 1], [], []>} : vector<16x128xbf16>, vector<128x128xbf16>, vector<16x128xf32> -> vector<16x128xf32>
    %c0_7 = arith.constant 0 : index
    %c0_8 = arith.constant 0 : index
    %c0_9 = arith.constant 0 : index
    %7 = vector.load %arg5[%c0_7, %c0_8, %c0_9] : memref<1x16x128xf32, #tpu.memory_space<vmem>>, vector<1x16x128xf32>
    %8 = vector.shape_cast %7 : vector<1x16x128xf32> to vector<16x128xf32>
    %9 = vector.shape_cast %6 : vector<16x128xf32> to vector<1x16x128xf32>
    tpu.vector_store %arg5[%c0_7, %c0_8, %c0_9], %9 {strides = array<i32>} : memref<1x16x128xf32, #tpu.memory_space<vmem>>, vector<1x16x128xf32>,
    return
  }
  func.func @transform_0(%arg0: i32, %arg1: i32) -> (i32, i32) {
    %c0_i32 = arith.constant 0 : i32
    %c0_i32_0 = arith.constant 0 : i32
    return %arg1, %c0_i32 : i32, i32
  }
  func.func @transform_1(%arg0: i32, %arg1: i32) -> (i32, i32, i32) {
    %c0_i32 = arith.constant 0 : i32
    %c0_i32_0 = arith.constant 0 : i32
    %c0_i32_1 = arith.constant 0 : i32
    return %arg0, %c0_i32, %c0_i32_0 : i32, i32, i32
  }
  func.func @transform_2(%arg0: i32, %arg1: i32) -> (i32, i32) {
    %c0_i32 = arith.constant 0 : i32
    %c0_i32_0 = arith.constant 0 : i32
    %c0_i32_1 = arith.constant 0 : i32
    return %c0_i32, %c0_i32_0 : i32, i32
  }
  func.func @transform_3(%arg0: i32, %arg1: i32) -> (i32, i32, i32) {
    %c0_i32 = arith.constant 0 : i32
    %c0_i32_0 = arith.constant 0 : i32
    return %arg0, %arg1, %c0_i32 : i32, i32, i32
  }
}

</mosaic_0001>

<llo_original>
// kernel: tpu_custom_call.1
$region0: #{tpu_custom_call.1}
  #allocation0 [shape = 'u32[]', space=smem, size = 0x4, offset = 0x4, fixed_abs, tag = 'smem constant byte address 0x4 - core index']
  #allocation1 [shape = 'u32[144,128]{1,0:T(1,128)}', space=vmem, size = 0x12000, scoped, tag = 'internal scratch']
  %s0 = inlined_call_operand.hbm [shape: bf16[16,16], index: 0, kind: input, shape index: {}]
  %s1 = inlined_call_operand.hbm [shape: bf16[4,16,128], index: 1, kind: input, shape index: {}]
  %s2 = inlined_call_operand.hbm [shape: bf16[128,128], index: 2, kind: input, shape index: {}]
  %s3 = inlined_call_operand.hbm [shape: f32[4,16,128], index: 3, kind: output, shape index: {}]
  %s4 = sld [smem:[#allocation0]]
  $region57: #{tpu_custom_call.1} parent=0
    _
  %s6 = ssub.s32 1, %s4
  %s7 = scalar_select 0, %s6, %s4
  $region1: #{tpu_custom_call.1} parent=0
    #allocation2 [shape = 'u8[4096]{0}', space=vmem, size = 0x1000, scoped, tag = 'input window, operand 0, single buffered']
    #allocation3 [shape = 's32[2]{0}', space=sflag, size = 0x8, scoped, tag = 'scoped memory for tpu_custom_call.1']
    #allocation4 [shape = 's32[2]{0}', space=sflag, size = 0x8, scoped, tag = 'scoped memory for tpu_custom_call.1']
    #allocation5 [shape = 'u8[8192]{0}', space=vmem, size = 0x2000, scoped, tag = 'input window, operand 1']
    #allocation6 [shape = 's32[2]{0}', space=sflag, size = 0x8, scoped, tag = 'scoped memory for tpu_custom_call.1']
    #allocation7 [shape = 'u8[32768]{0}', space=vmem, size = 0x8000, scoped, tag = 'input window, operand 2, single buffered']
    #allocation8 [shape = 'u8[16384]{0}', space=vmem, size = 0x4000, scoped, tag = 'output window, operand 0']
    %8 = vsyncpa [#allocation3], 0
    %9 = vsyncpa [#allocation6], 0
    %s10 = scalar_lea.sflag [#allocation6], 1
    %11 = vsyncpa %s10, 0
    %12 = vsyncpa [#allocation4], 0
    %s13 = scalar_lea.sflag [#allocation4], 1
    %14 = vsyncpa %s13, 0
    loop: start=0, step=1, limit=6
    $region2: #{tpu_custom_call.1} parent=1 // loop_pre_header
      _
    $region3: #{tpu_custom_call.1} parent=1 // loop_header
      %s16 = sphi 0, %s20
      %p17 = scmp.ge.s32.totalorder %s16, 6
      %s23 = sphi 0, %s35
      %s24 = sphi 0, %s31
      %s25 = sphi 0, %s23
      %s26 = sphi 0, %s24
      %s27 = sphi 0, %s25
      %s28 = sphi 0, %s26
      %s38 = sphi 0, %s40
      %s41 = sphi 0, %s38
      %s42 = sphi 0, %s41
      %s58 = sphi 0, %s42
      %s64 = sphi 0, %s66
      %s67 = sphi 0, %s64
      %s68 = sphi 0, %s67
      %s84 = sphi 0, %s68
      %s88 = sphi 0, %s88
      %s90 = sphi 0, %s88
      %s91 = sphi 0, %s90
      %s105 = sphi 0, %s91
      %s113 = sphi 0, %s115
      %s116 = sphi 0, %s113
      %s117 = sphi 0, %s116
      %s133 = sphi 0, %s117
    $region4: #{tpu_custom_call.1} parent=1 // loop_header_branch
      %19 = sbr.rel (%p17) target = $region8
    $region5: #{tpu_custom_call.1} parent=1 // loop_body
      %s21 = ssub.s32 %s16, 1
      %s22 = ssub.s32 %s16, 2
      %s29 = sadd.s32 1, %s24
      %p30 = scmp.ge.s32.totalorder %s29, 1
      %s31 = scalar_select %p30, 0, %s29
      %s32 = sadd.s32 1, %s23
      %s33 = scalar_select %p30, %s32, %s23
      %p34 = scmp.ge.s32.totalorder %s33, 4
      %s35 = scalar_select %p34, 0, %s33
      %s36 = ssub.s32 %s24, %s31
      %p37 = scmp.eq.s32.totalorder %s36, 0
      %s39 = sadd.s32 %s38, 1
      %s40 = scalar_select %p37, %s38, %s39
      %p43 = pneg %p37
      %p44 = scmp.eq.s32.totalorder %s16, 3
      %p45 = por %p43, %p44
      %p46 = scmp.ne.s32.totalorder %s38, %s41
      %p47 = scmp.eq.s32.totalorder %s16, 0
      %p48 = por %p46, %p47
      %p49 = scmp.ne.s32.totalorder %s38, %s41
      %p50 = scmp.eq.s32.totalorder %s21, 3
      %p51 = por %p49, %p50
      %p52 = scmp.ne.s32.totalorder %s41, %s42
      %p53 = scmp.eq.s32.totalorder %s21, 0
      %p54 = por %p52, %p53
      %p55 = scmp.ne.s32.totalorder %s41, %s42
      %p56 = scmp.eq.s32.totalorder %s22, 3
      %p57 = por %p55, %p56
      %p59 = scmp.ne.s32.totalorder %s42, %s58
      %p60 = scmp.eq.s32.totalorder %s22, 0
      %p61 = por %p59, %p60
      %s62 = ssub.s32 %s23, %s35
      %p63 = scmp.eq.s32.totalorder %s62, 0
      %s65 = sadd.s32 %s64, 1
      %s66 = scalar_select %p63, %s64, %s65
      %p69 = pneg %p63
      %p70 = scmp.eq.s32.totalorder %s16, 3
      %p71 = por %p69, %p70
      %p72 = scmp.ne.s32.totalorder %s64, %s67
      %p73 = scmp.eq.s32.totalorder %s16, 0
      %p74 = por %p72, %p73
      %p75 = scmp.ne.s32.totalorder %s64, %s67
      %p76 = scmp.eq.s32.totalorder %s21, 3
      %p77 = por %p75, %p76
      %p78 = scmp.ne.s32.totalorder %s67, %s68
      %p79 = scmp.eq.s32.totalorder %s21, 0
      %p80 = por %p78, %p79
      %p81 = scmp.ne.s32.totalorder %s67, %s68
      %p82 = scmp.eq.s32.totalorder %s22, 3
      %p83 = por %p81, %p82
      %p85 = scmp.ne.s32.totalorder %s68, %s84
      %p86 = scmp.eq.s32.totalorder %s22, 0
      %p87 = por %p85, %p86
      %s89 = sadd.s32 %s88, 1
      %p92 = scmp.eq.s32.totalorder %s16, 3
      %p93 = scmp.ne.s32.totalorder %s88, %s90
      %p94 = scmp.eq.s32.totalorder %s16, 0
      %p95 = por %p93, %p94
      %p96 = scmp.ne.s32.totalorder %s88, %s90
      %p97 = scmp.eq.s32.totalorder %s21, 3
      %p98 = por %p96, %p97
      %p99 = scmp.ne.s32.totalorder %s90, %s91
      %p100 = scmp.eq.s32.totalorder %s21, 0
      %p101 = por %p99, %p100
      %p102 = scmp.ne.s32.totalorder %s90, %s91
      %p103 = scmp.eq.s32.totalorder %s22, 3
      %p104 = por %p102, %p103
      %p106 = scmp.ne.s32.totalorder %s91, %s105
      %p107 = scmp.eq.s32.totalorder %s22, 0
      %p108 = por %p106, %p107
      %s109 = ssub.s32 %s23, %s35
      %s110 = ssub.s32 %s24, %s31
      %s111 = sor.u32 %s109, %s110
      %p112 = scmp.eq.s32.totalorder %s111, 0
      %s114 = sadd.s32 %s113, 1
      %s115 = scalar_select %p112, %s113, %s114
      %p118 = pneg %p112
      %p119 = scmp.eq.s32.totalorder %s16, 3
      %p120 = por %p118, %p119
      %p121 = scmp.ne.s32.totalorder %s113, %s116
      %p122 = scmp.eq.s32.totalorder %s16, 0
      %p123 = por %p121, %p122
      %p124 = scmp.ne.s32.totalorder %s113, %s116
      %p125 = scmp.eq.s32.totalorder %s21, 3
      %p126 = por %p124, %p125
      %p127 = scmp.ne.s32.totalorder %s116, %s117
      %p128 = scmp.eq.s32.totalorder %s21, 0
      %p129 = por %p127, %p128
      %p130 = scmp.ne.s32.totalorder %s116, %s117
      %p131 = scmp.eq.s32.totalorder %s22, 3
      %p132 = por %p130, %p131
      %p134 = scmp.ne.s32.totalorder %s117, %s133
      %p135 = scmp.eq.s32.totalorder %s22, 0
      %p136 = por %p134, %p135
      %p137 = scmp.le.s32.totalorder 1, %s16
      %p138 = scmp.lt.s32.totalorder %s16, 5
      %p139 = pnand %p137, %p138
      %p140 = pneg %p139
      // Predicated region
      $region9: #{tpu_custom_call.1} parent=5 // pred_check
        _
      $region10: #{tpu_custom_call.1} parent=5 // pred_check_branch
        %142 = sbr.rel (%p139) target = $region12
      $region11: #{tpu_custom_call.1} parent=5 // pred_region
        %s143 = ssub.s32 %s16, 1
        // Predicated region
        $region13: #{tpu_custom_call.1} parent=11 // pred_check
          %p144 = pneg %p54
        $region14: #{tpu_custom_call.1} parent=11 // pred_check_branch
          %146 = sbr.rel (%p144) target = $region16
        $region15: #{tpu_custom_call.1} parent=11 // pred_region
          %s147 = smul.u32 2, %s26
          %s149 = ssub.s32 128, 128
          %150 = vsyncadd [#allocation3], %s149
          %s151 = smul.addr %s147, 64
          %s152 = scalar_lea.hbm %s0, %s151
          %s153 = sshll.u32 [#allocation2], 4
          %s154 = int_to_ptr.vmem [resolvable:$true] %s153
          %159 = dma.hbm_to_vmem [thread:$0]  %s152, 128, %s154, [#allocation3], 64, 64, 4
        $region16: #{tpu_custom_call.1} parent=11 // pred_fallthru
          _
        // Predicated region
        $region17: #{tpu_custom_call.1} parent=11 // pred_check
          %p160 = pneg %p101
        $region18: #{tpu_custom_call.1} parent=11 // pred_check_branch
          %162 = sbr.rel (%p160) target = $region20
        $region19: #{tpu_custom_call.1} parent=11 // pred_region
          %s164 = ssub.s32 1024, 1024
          %165 = vsyncadd [#allocation6], %s164
          %s166 = sshll.u32 [#allocation7], 4
          %s167 = int_to_ptr.vmem [resolvable:$true] %s166
          %172 = dma.hbm_to_vmem [thread:$0]  %s2, 1024, %s167, [#allocation6], 64, 64, 4
        $region20: #{tpu_custom_call.1} parent=11 // pred_fallthru
          _
      $region12: #{tpu_custom_call.1} parent=5 // pred_fallthru
        _
      %p173 = scmp.lt.s32.totalorder %s16, 4
      // Predicated region
      $region21: #{tpu_custom_call.1} parent=5 // pred_check
        %p174 = pneg %p173
      $region22: #{tpu_custom_call.1} parent=5 // pred_check_branch
        %176 = sbr.rel (%p174) target = $region24
      $region23: #{tpu_custom_call.1} parent=5 // pred_region
        // Predicated region
        $region25: #{tpu_custom_call.1} parent=23 // pred_check
          %p177 = pneg %p74
        $region26: #{tpu_custom_call.1} parent=23 // pred_check_branch
          %179 = sbr.rel (%p177) target = $region28
        $region27: #{tpu_custom_call.1} parent=23 // pred_region
          %s180 = sand.u32 %s16, 1
          %s181 = scalar_lea.sflag [#allocation6], %s180
          %s182 = sand.u32 %s64, 1
          %s183 = smul.addr %s182, 8
          %s184 = scalar_lea.vmem [#allocation5], %s183
          %s186 = ssub.s32 128, 128
          %187 = vsyncadd %s181, %s186
          %s188 = smul.addr %s23, 2
          %s189 = smul.addr %s188, 64
          %s190 = scalar_lea.hbm %s1, %s189
          %s191 = sshll.u32 %s184, 4
          %s192 = int_to_ptr.vmem [resolvable:$true] %s191
          %197 = dma.hbm_to_vmem [thread:$0]  %s190, 128, %s192, %s181, 64, 64, 4
        $region28: #{tpu_custom_call.1} parent=23 // pred_fallthru
          _
      $region24: #{tpu_custom_call.1} parent=5 // pred_fallthru
        _
      %p198 = scmp.le.s32.totalorder 1, %s16
      %p199 = scmp.lt.s32.totalorder %s16, 5
      %p200 = pnand %p198, %p199
      %p201 = pneg %p200
      // Predicated region
      $region29: #{tpu_custom_call.1} parent=5 // pred_check
        _
      $region30: #{tpu_custom_call.1} parent=5 // pred_check_branch
        %203 = sbr.rel (%p200) target = $region32
      $region31: #{tpu_custom_call.1} parent=5 // pred_region
        %s204 = ssub.s32 %s16, 1
        // Predicated region
        $region33: #{tpu_custom_call.1} parent=31 // pred_check
          %p205 = pneg %p54
        $region34: #{tpu_custom_call.1} parent=31 // pred_check_branch
          %207 = sbr.rel (%p205) target = $region36
        $region35: #{tpu_custom_call.1} parent=31 // pred_region
          %208 = dma.done [#allocation3], 128
        $region36: #{tpu_custom_call.1} parent=31 // pred_fallthru
          _
        %s209 = sand.u32 %s21, 1
        %s210 = scalar_lea.sflag [#allocation6], %s209
        %s211 = sand.u32 %s67, 1
        %s212 = smul.addr %s211, 8
        %s213 = scalar_lea.vmem [#allocation5], %s212
        // Predicated region
        $region37: #{tpu_custom_call.1} parent=31 // pred_check
          %p214 = pneg %p80
        $region38: #{tpu_custom_call.1} parent=31 // pred_check_branch
          %216 = sbr.rel (%p214) target = $region40
        $region39: #{tpu_custom_call.1} parent=31 // pred_region
          %217 = dma.done %s210, 128
        $region40: #{tpu_custom_call.1} parent=31 // pred_fallthru
          _
        // Predicated region
        $region41: #{tpu_custom_call.1} parent=31 // pred_check
          %p218 = pneg %p101
        $region42: #{tpu_custom_call.1} parent=31 // pred_check_branch
          %220 = sbr.rel (%p218) target = $region44
        $region43: #{tpu_custom_call.1} parent=31 // pred_region
          %221 = dma.done [#allocation6], 1024
        $region44: #{tpu_custom_call.1} parent=31 // pred_fallthru
          _
        %p222 = pneg %p54
        %p223 = pneg %p51
        %s224 = sand.u32 %s21, 1
        %s225 = scalar_lea.sflag [#allocation6], %s224
        %s226 = sand.u32 %s67, 1
        %s227 = smul.addr %s226, 8
        %s228 = scalar_lea.vmem [#allocation5], %s227
        %p229 = pneg %p80
        %p230 = pneg %p77
        %p231 = pneg %p101
        %p232 = pneg %p98
        %p233 = pneg %p129
        %p234 = pneg %p126
        %s235 = sand.u32 %s116, 1
        %s236 = scalar_lea.sflag [#allocation4], %s235
        %s237 = sand.u32 %s116, 1
        %s238 = smul.addr %s237, 16
        %s239 = scalar_lea.vmem [#allocation8], %s238
        %s240 = smul.u32 2, %s26
        %s241 = smul.u32 2, %s26
        %v243 = vld [vmem:[#allocation2] sm:$0xf]
        %v244 = vld [vmem:[#allocation2 + $0x4] sm:$0xf]
        %v245 = vld [vmem:[%s213] sm:$0xf]
        %v246 = vld [vmem:[%s213 + $0x4] sm:$0xf]
        %v249 = vunpack.c.l.b16 %v243
        %v250 = vunpack.c.l.b16 %v244
        %v251 = vpack.c.b16 %v250, %v249
        %v254 = vunpack.c.l.b16 %v245
        %v255 = vunpack.c.l.b16 %v246
        %v256 = vpack.c.b16 %v255, %v254
        %vm258 = vcmask 130048
        %v260 = vsel %vm258, %v251, 0
        %262 = vmatprep.subr.bf16.mxu0 0
        %263 = vmatpush1.bf16.msra.mxu0 %v256
        %264 = vmatprep.subr.bf16.mxu0 0
        %265 = vmatpush1.bf16.msra.mxu0 0
        %266 = vmatprep.subr.bf16.mxu0 0
        %267 = vmatpush1.bf16.msra.mxu0 0
        %268 = vmatprep.subr.bf16.mxu0 0
        %269 = vmatpush1.bf16.msra.mxu0 0
        %270 = vmatprep.subr.bf16.mxu0 0
        %271 = vmatpush1.bf16.msra.mxu0 0
        %272 = vmatprep.subr.bf16.mxu0 0
        %273 = vmatpush1.bf16.msra.mxu0 0
        %274 = vmatprep.subr.bf16.mxu0 0
        %275 = vmatpush1.bf16.msra.mxu0 0
        %276 = vmatprep.subr.bf16.mxu0 0
        %277 = vmatpush1.bf16.msra.mxu0 0
        %278 = vmatprep.subr.bf16.mxu0 0
        %279 = vmatpush1.bf16.msra.mxu0 0
        %280 = vmatprep.subr.bf16.mxu0 0
        %281 = vmatpush1.bf16.msra.mxu0 0
        %282 = vmatprep.subr.bf16.mxu0 0
        %283 = vmatpush1.bf16.msra.mxu0 0
        %284 = vmatprep.subr.bf16.mxu0 0
        %285 = vmatpush1.bf16.msra.mxu0 0
        %286 = vmatprep.subr.bf16.mxu0 0
        %287 = vmatpush1.bf16.msra.mxu0 0
        %288 = vmatprep.subr.bf16.mxu0 0
        %289 = vmatpush1.bf16.msra.mxu0 0
        %290 = vmatprep.subr.bf16.mxu0 0
        %291 = vmatpush1.bf16.msra.mxu0 0
        %292 = vmatprep.subr.bf16.mxu0 0
        %293 = vmatpush1.bf16.msra.mxu0 0
        %294 = vmatprep.mubr.bf16.mxu0 0
        %295 = vmatmul.mubr.bf16.gmra.mrb[0].mxu0 %v260
        %v296 = vpop.f32.mrb[0].mxu0
        %v297 = vadd.f32 0.0, %v296
        %v298 = vpop.f32.mrb[0].mxu0
        %v299 = vpop.f32.mrb[0].mxu0
        %v300 = vadd.f32 0.0, %v299
        %v301 = vpop.f32.mrb[0].mxu0
        %302 = vdwg.mxu0
        %v303 = vpack.c.bf16 %v300, %v297
        %v304 = vld [vmem:[#allocation7] sm:$0xf]
        %v305 = vld [vmem:[#allocation7 + $0x4] sm:$0xf]
        %v306 = vld [vmem:[#allocation7 + $0x8] sm:$0xf]
        %v307 = vld [vmem:[#allocation7 + $0xc] sm:$0xf]
        %v308 = vld [vmem:[#allocation7 + $0x10] sm:$0xf]
        %v309 = vld [vmem:[#allocation7 + $0x14] sm:$0xf]
        %v310 = vld [vmem:[#allocation7 + $0x18] sm:$0xf]
        %v311 = vld [vmem:[#allocation7 + $0x1c] sm:$0xf]
        %v312 = vld [vmem:[#allocation7 + $0x20] sm:$0xf]
        %v313 = vld [vmem:[#allocation7 + $0x24] sm:$0xf]
        %v314 = vld [vmem:[#allocation7 + $0x28] sm:$0xf]
        %v315 = vld [vmem:[#allocation7 + $0x2c] sm:$0xf]
        %v316 = vld [vmem:[#allocation7 + $0x30] sm:$0xf]
        %v317 = vld [vmem:[#allocation7 + $0x34] sm:$0xf]
        %v318 = vld [vmem:[#allocation7 + $0x38] sm:$0xf]
        %v319 = vld [vmem:[#allocation7 + $0x3c] sm:$0xf]
        %v336 = vunpack.c.l.b16 %v304
        %v337 = vunpack.c.l.b16 %v305
        %v338 = vunpack.c.l.b16 %v306
        %v339 = vunpack.c.l.b16 %v307
        %v340 = vunpack.c.l.b16 %v308
        %v341 = vunpack.c.l.b16 %v309
        %v342 = vunpack.c.l.b16 %v310
        %v343 = vunpack.c.l.b16 %v311
        %v344 = vunpack.c.l.b16 %v312
        %v345 = vunpack.c.l.b16 %v313
        %v346 = vunpack.c.l.b16 %v314
        %v347 = vunpack.c.l.b16 %v315
        %v348 = vunpack.c.l.b16 %v316
        %v349 = vunpack.c.l.b16 %v317
        %v350 = vunpack.c.l.b16 %v318
        %v351 = vunpack.c.l.b16 %v319
        %v352 = vpack.c.b16 %v337, %v336
        %v353 = vpack.c.b16 %v339, %v338
        %v354 = vpack.c.b16 %v341, %v340
        %v355 = vpack.c.b16 %v343, %v342
        %v356 = vpack.c.b16 %v345, %v344
        %v357 = vpack.c.b16 %v347, %v346
        %v358 = vpack.c.b16 %v349, %v348
        %v359 = vpack.c.b16 %v351, %v350
        %368 = vmatprep.subr.bf16.mxu0 0
        %369 = vmatpush1.bf16.msra.mxu0 %v352
        %370 = vmatprep.subr.bf16.mxu0 0
        %371 = vmatpush1.bf16.msra.mxu0 %v353
        %372 = vmatprep.subr.bf16.mxu0 0
        %373 = vmatpush1.bf16.msra.mxu0 %v354
        %374 = vmatprep.subr.bf16.mxu0 0
        %375 = vmatpush1.bf16.msra.mxu0 %v355
        %376 = vmatprep.subr.bf16.mxu0 0
        %377 = vmatpush1.bf16.msra.mxu0 %v356
        %378 = vmatprep.subr.bf16.mxu0 0
        %379 = vmatpush1.bf16.msra.mxu0 %v357
        %380 = vmatprep.subr.bf16.mxu0 0
        %381 = vmatpush1.bf16.msra.mxu0 %v358
        %382 = vmatprep.subr.bf16.mxu0 0
        %383 = vmatpush1.bf16.msra.mxu0 %v359
        %384 = vmatprep.subr.bf16.mxu0 0
        %385 = vmatpush1.bf16.msra.mxu0 0
        %386 = vmatprep.subr.bf16.mxu0 0
        %387 = vmatpush1.bf16.msra.mxu0 0
        %388 = vmatprep.subr.bf16.mxu0 0
        %389 = vmatpush1.bf16.msra.mxu0 0
        %390 = vmatprep.subr.bf16.mxu0 0
        %391 = vmatpush1.bf16.msra.mxu0 0
        %392 = vmatprep.subr.bf16.mxu0 0
        %393 = vmatpush1.bf16.msra.mxu0 0
        %394 = vmatprep.subr.bf16.mxu0 0
        %395 = vmatpush1.bf16.msra.mxu0 0
        %396 = vmatprep.subr.bf16.mxu0 0
        %397 = vmatpush1.bf16.msra.mxu0 0
        %398 = vmatprep.subr.bf16.mxu0 0
        %399 = vmatpush1.bf16.msra.mxu0 0
        %400 = vmatprep.mubr.bf16.mxu0 0
        %401 = vmatmul.mubr.bf16.gmra.mrb[0].mxu0 %v303
        %v402 = vpop.f32.mrb[0].mxu0
        %v403 = vadd.f32 0.0, %v402
        %v404 = vpop.f32.mrb[0].mxu0
        %v405 = vpop.f32.mrb[0].mxu0
        %v406 = vadd.f32 0.0, %v405
        %v407 = vpop.f32.mrb[0].mxu0
        %408 = vdwg.mxu0
        %409 = vst [vmem:[%s239] sm:$0xff] %v403
        %410 = vst [vmem:[%s239 + $0x8] sm:$0xff] %v406
        %s411 = sand.u32 %s116, 1
        %s412 = scalar_lea.sflag [#allocation4], %s411
        %s413 = sand.u32 %s116, 1
        %s414 = smul.addr %s413, 16
        %s415 = scalar_lea.vmem [#allocation8], %s414
        // Predicated region
        $region45: #{tpu_custom_call.1} parent=31 // pred_check
          %p416 = pneg %p126
        $region46: #{tpu_custom_call.1} parent=31 // pred_check_branch
          %418 = sbr.rel (%p416) target = $region48
        $region47: #{tpu_custom_call.1} parent=31 // pred_region
          %s419 = smul.u32 2, %s26
          %s421 = ssub.s32 256, 256
          %422 = vsyncadd %s412, %s421
          %s423 = smul.addr %s25, 2
          %s424 = sadd.s32 %s419, %s423
          %s425 = smul.addr %s424, 128
          %s426 = scalar_lea.hbm %s3, %s425
          %s427 = sshll.u32 %s415, 4
          %s428 = int_to_ptr.vmem [resolvable:$true] %s427
          %433 = dma.vmem_to_hbm [thread:$0]  %s428, 256, %s426, %s412, 128, 128, 8
        $region48: #{tpu_custom_call.1} parent=31 // pred_fallthru
          _
      $region32: #{tpu_custom_call.1} parent=5 // pred_fallthru
        _
      %p434 = scmp.le.s32.totalorder 2, %s16
      // Predicated region
      $region49: #{tpu_custom_call.1} parent=5 // pred_check
        %p435 = pneg %p434
      $region50: #{tpu_custom_call.1} parent=5 // pred_check_branch
        %437 = sbr.rel (%p435) target = $region52
      $region51: #{tpu_custom_call.1} parent=5 // pred_region
        %s438 = ssub.s32 %s16, 2
        // Predicated region
        $region53: #{tpu_custom_call.1} parent=51 // pred_check
          %p439 = pneg %p132
        $region54: #{tpu_custom_call.1} parent=51 // pred_check_branch
          %441 = sbr.rel (%p439) target = $region56
        $region55: #{tpu_custom_call.1} parent=51 // pred_region
          %s442 = sand.u32 %s117, 1
          %s443 = scalar_lea.sflag [#allocation4], %s442
          %s444 = sand.u32 %s117, 1
          %s445 = smul.addr %s444, 16
          %s446 = scalar_lea.vmem [#allocation8], %s445
          %447 = dma.done %s443, 256
        $region56: #{tpu_custom_call.1} parent=51 // pred_fallthru
          _
      $region52: #{tpu_custom_call.1} parent=5 // pred_fallthru
        _
    $region6: #{tpu_custom_call.1} parent=1 // loop_footer
      %s20 = sadd.s32 1, %s16
    $region7: #{tpu_custom_call.1} parent=1 // loop_footer_branch
      %15 = sbr.rel target = $region3
    $region8: #{tpu_custom_call.1} parent=1 // loop_exit
      _
    %448 = vsyncpa [#allocation3], 1
    %s449 = scalar_lea.sflag [#allocation3], 1
    %450 = vsyncpa %s449, 1
    %451 = vsyncpa [#allocation6], 1
    %s452 = scalar_lea.sflag [#allocation6], 1
    %453 = vsyncpa %s452, 1
    %454 = vsyncpa [#allocation4], 1
    %s455 = scalar_lea.sflag [#allocation4], 1
    %456 = vsyncpa %s455, 1

</llo_original>
